<compile_context>
chip_gen: v7x
topology: tpu7x:2x2x1
jax: 0.10.0
libtpu: 0.0.40
codegen_flags: <defaults>
</compile_context>

<pallas_src>
import jax
import jax.numpy as jnp
from jax.experimental import pallas as pl
from jax.experimental.pallas import tpu as pltpu


def _project_readout_kernel(tok_ref, w_ref, cls_ref, o_ref):
    # tok_ref: (1, tm, C)   w_ref: (C, C)   cls_ref: (1, 1, C)   o_ref: (1, tm, C)
    tok = tok_ref[0]                                   # (tm, C)
    acc = jnp.dot(tok, w_ref[...], preferred_element_type=jnp.float32)
    acc = acc + cls_ref[0].astype(jnp.float32)         # (1, C) broadcast over rows
    # exact GELU (matches torch.nn.GELU default, erf-based)
    inv_sqrt2 = jnp.float32(0.7071067811865475)
    out = 0.5 * acc * (1.0 + jax.lax.erf(acc * inv_sqrt2))
    o_ref[0] = out.astype(o_ref.dtype)


def project_readout(x, w, b, start_index=1, tm=512, use_bf16_mxu=False):
    """x: (B, S, C); w: (2C, C) (= torch weight.T); b: (C,).

    Returns (B, S - start_index, C) in x.dtype.
    """
    B, S, C = x.shape
    T = S - start_index
    assert w.shape == (2 * C, C) and b.shape == (C,)
    out_dtype = x.dtype

    tokens = x[:, start_index:, :]                     # (B, T, C)  cheap slice, no concat
    cls = x[:, 0, :]                                   # (B, C)
    w_top = w[:C, :]                                   # token half of the weight
    w_bot = w[C:, :]                                   # readout half of the weight

    if use_bf16_mxu:
        # bf16 MXU operands, f32 accumulation (halves HBM bytes on the hot path).
        tokens = tokens.astype(jnp.bfloat16)
        cls = cls.astype(jnp.bfloat16)
        w_top = w_top.astype(jnp.bfloat16)
        w_bot = w_bot.astype(jnp.bfloat16)

    # Tiny (B, C) pre-projection of the readout token, bias folded in; stays f32.
    cls_proj = (jnp.dot(cls, w_bot, preferred_element_type=jnp.float32)
                + b.astype(jnp.float32))               # (B, C)
    cls_proj = cls_proj.reshape(B, 1, C)               # (B, 1, C) for a (1,1,C) block

    # Row-tile size: large (MXU/HBM friendly) but a multiple of 8, or the full T.
    if T <= tm:
        tm_eff = T
    else:
        tm_eff = max(8, (tm // 8) * 8)

    grid = (B, pl.cdiv(T, tm_eff))

    out = pl.pallas_call(
        _project_readout_kernel,
        out_shape=jax.ShapeDtypeStruct((B, T, C), out_dtype),
        grid_spec=pltpu.PrefetchScalarGridSpec(
            num_scalar_prefetch=0,
            grid=grid,
            in_specs=[
                # token row tile for (batch bb, tile i)
                pl.BlockSpec((1, tm_eff, C), lambda bb, i: (bb, i, 0)),
                # full (C, C) weight, grid-invariant / resident
                pl.BlockSpec((C, C), lambda bb, i: (0, 0)),
                # per-batch readout projection row (bias already folded in)
                pl.BlockSpec((1, 1, C), lambda bb, i: (bb, 0, 0)),
            ],
            out_specs=pl.BlockSpec((1, tm_eff, C), lambda bb, i: (bb, i, 0)),
        ),
        compiler_params=pltpu.CompilerParams(
            dimension_semantics=("parallel", "parallel"),
            vmem_limit_bytes=48 * 1024 * 1024,
        ),
    )(tokens, w_top, cls_proj)

    return out


def _reference(x, w, b, start_index=1):
    tokens = x[:, start_index:, :]
    readout = jnp.broadcast_to(x[:, 0:1, :], tokens.shape)
    feats = jnp.concatenate([tokens, readout], axis=-1)
    return jax.nn.gelu(feats @ w + b, approximate=False)


if __name__ == "__main__":
    B, S, C = 2, 8, 32          # in_features = C = 32  (demo shape)
    start_index = 1

    key = jax.random.PRNGKey(0)
    kx, kw, kb = jax.random.split(key, 3)

    x = jax.random.normal(kx, (B, S, C), dtype=jnp.float32)
    # Linear(2C -> C): store weight as (2C, C) = W_torch.T ; bias (C,)
    w = jax.random.normal(kw, (2 * C, C), dtype=jnp.float32) * 0.05
    b = jax.random.normal(kb, (C,), dtype=jnp.float32) * 0.05

    ref = _reference(x, w, b, start_index=start_index)

    # f32 path (exact, matches the PyTorch module numerics)
    out = project_readout(x, w, b, start_index=start_index)
    out = jax.block_until_ready(out)
    assert out.shape == (B, S - start_index, C), out.shape
    assert jnp.allclose(out, ref, atol=1e-5, rtol=1e-5), (
        float(jnp.max(jnp.abs(out - ref))))

    # bf16-MXU path (f32 accumulation) — looser tolerance by construction
    out_bf16 = project_readout(x, w, b, start_index=start_index,
                               use_bf16_mxu=True)
    out_bf16 = jax.block_until_ready(out_bf16)
    assert out_bf16.shape == (B, S - start_index, C), out_bf16.shape
    assert jnp.allclose(out_bf16, ref, atol=5e-2, rtol=5e-2), (
        float(jnp.max(jnp.abs(out_bf16 - ref))))

    print("KERNEL_OK")
</pallas_src>

<mosaic_0001>
module attributes {stable_mosaic.version = 11 : i64} {
  func.func @_project_readout_kernel(%arg0: i32, %arg1: i32, %arg2: memref<1x7x32xf32, #tpu.memory_space<vmem>>, %arg3: memref<32x32xf32, #tpu.memory_space<vmem>>, %arg4: memref<1x1x32xf32, #tpu.memory_space<vmem>>, %arg5: memref<1x7x32xf32, #tpu.memory_space<vmem>>) attributes {dimension_semantics = [#tpu.dimension_semantics<parallel>, #tpu.dimension_semantics<parallel>], iteration_bounds = array<i64: 2, 1>, scalar_prefetch = 0 : i64, scratch_operands = 0 : i64, tpu.core_type = #tpu.core_type<tc>, window_params = [{transform_indices = @transform_0, window_bounds = array<i64: 1, 7, 32>}, {pipeline_mode = #tpu.pipeline_mode<synchronous>, transform_indices = @transform_1, window_bounds = array<i64: 32, 32>}, {transform_indices = @transform_2, window_bounds = array<i64: 1, 1, 32>}, {transform_indices = @transform_3, window_bounds = array<i64: 1, 7, 32>}]} {
    %c0 = arith.constant 0 : index
    %c0_0 = arith.constant 0 : index
    %c0_1 = arith.constant 0 : index
    %0 = vector.load %arg2[%c0, %c0_0, %c0_1] : memref<1x7x32xf32, #tpu.memory_space<vmem>>, vector<1x7x32xf32>
    %1 = vector.shape_cast %0 : vector<1x7x32xf32> to vector<7x32xf32>
    %c0_2 = arith.constant 0 : index
    %c0_3 = arith.constant 0 : index
    %2 = vector.load %arg3[%c0_2, %c0_3] : memref<32x32xf32, #tpu.memory_space<vmem>>, vector<32x32xf32>
    %cst = arith.constant dense<0.000000e+00> : vector<7x32xf32>
    %3 = tpu.matmul %1, %2, %cst {dimension_numbers = #tpu.dot_dimension_numbers<[1], [0], [0], [1], [0, 0, 1, 1], [], []>} : vector<7x32xf32>, vector<32x32xf32>, vector<7x32xf32> -> vector<7x32xf32>
    %c0_4 = arith.constant 0 : index
    %c0_5 = arith.constant 0 : index
    %c0_6 = arith.constant 0 : index
    %4 = vector.load %arg4[%c0_4, %c0_5, %c0_6] : memref<1x1x32xf32, #tpu.memory_space<vmem>>, vector<1x1x32xf32>
    %5 = vector.shape_cast %4 : vector<1x1x32xf32> to vector<1x32xf32>
    %6 = vector.broadcast %5 : vector<1x32xf32> to vector<7x32xf32>
    %7 = arith.addf %3, %6 : vector<7x32xf32>
    %cst_7 = arith.constant 5.000000e-01 : f32
    %8 = vector.broadcast %cst_7 : f32 to vector<7x32xf32>
    %9 = arith.mulf %8, %7 : vector<7x32xf32>
    %cst_8 = arith.constant 0.707106769 : f32
    %10 = vector.broadcast %cst_8 : f32 to vector<7x32xf32>
    %11 = arith.mulf %7, %10 : vector<7x32xf32>
    %12 = math.erf %11 : vector<7x32xf32>
    %cst_9 = arith.constant 1.000000e+00 : f32
    %13 = vector.broadcast %cst_9 : f32 to vector<7x32xf32>
    %14 = arith.addf %13, %12 : vector<7x32xf32>
    %15 = arith.mulf %9, %14 : vector<7x32xf32>
    %c0_10 = arith.constant 0 : index
    %c0_11 = arith.constant 0 : index
    %c0_12 = arith.constant 0 : index
    %16 = vector.load %arg5[%c0_10, %c0_11, %c0_12] : memref<1x7x32xf32, #tpu.memory_space<vmem>>, vector<1x7x32xf32>
    %17 = vector.shape_cast %16 : vector<1x7x32xf32> to vector<7x32xf32>
    %18 = vector.shape_cast %15 : vector<7x32xf32> to vector<1x7x32xf32>
    tpu.vector_store %arg5[%c0_10, %c0_11, %c0_12], %18 {strides = array<i32>} : memref<1x7x32xf32, #tpu.memory_space<vmem>>, vector<1x7x32xf32>,
    return
  }
  func.func @transform_0(%arg0: i32, %arg1: i32) -> (i32, i32, i32) {
    %c0_i32 = arith.constant 0 : i32
    %c0_i32_0 = arith.constant 0 : i32
    return %arg0, %arg1, %c0_i32 : i32, i32, i32
  }
  func.func @transform_1(%arg0: i32, %arg1: i32) -> (i32, i32) {
    %c0_i32 = arith.constant 0 : i32
    %c0_i32_0 = arith.constant 0 : i32
    %c0_i32_1 = arith.constant 0 : i32
    return %c0_i32, %c0_i32_0 : i32, i32
  }
  func.func @transform_2(%arg0: i32, %arg1: i32) -> (i32, i32, i32) {
    %c0_i32 = arith.constant 0 : i32
    %c0_i32_0 = arith.constant 0 : i32
    %c0_i32_1 = arith.constant 0 : i32
    return %arg0, %c0_i32, %c0_i32_0 : i32, i32, i32
  }
  func.func @transform_3(%arg0: i32, %arg1: i32) -> (i32, i32, i32) {
    %c0_i32 = arith.constant 0 : i32
    %c0_i32_0 = arith.constant 0 : i32
    return %arg0, %arg1, %c0_i32 : i32, i32, i32
  }
}

</mosaic_0001>

<llo_original>
// kernel: tpu_custom_call.1
$region0: #{tpu_custom_call.1}
  #allocation0 [shape = 'u32[]', space=smem, size = 0x4, offset = 0x4, fixed_abs, tag = 'smem constant byte address 0x4 - core index']
  #allocation1 [shape = 'u32[144,128]{1,0:T(1,128)}', space=vmem, size = 0x12000, scoped, tag = 'internal scratch']
  %s0 = inlined_call_operand.vmem [shape: f32[2,7,32], index: 0, kind: input, shape index: {}]
  %s1 = inlined_call_operand.vmem [shape: f32[32,32], index: 1, kind: input, shape index: {}]
  %s2 = inlined_call_operand.vmem [shape: f32[2,1,32], index: 2, kind: input, shape index: {}]
  %s3 = inlined_call_operand.vmem [shape: f32[2,7,32], index: 3, kind: output, shape index: {}]
  %s4 = sld [smem:[#allocation0]]
  $region45: #{tpu_custom_call.1} parent=0
    _
  %s6 = ssub.s32 1, %s4
  %s7 = scalar_select 0, %s6, %s4
  loop: start=0, step=1, limit=4
  $region2: #{tpu_custom_call.1} parent=0 // loop_pre_header
    _
  $region3: #{tpu_custom_call.1} parent=0 // loop_header
    %s9 = sphi 0, %s13
    %p10 = scmp.ge.s32.totalorder %s9, 4
    %s16 = sphi 0, %s28
    %s17 = sphi 0, %s24
    %s18 = sphi 0, %s16
    %s19 = sphi 0, %s17
    %s20 = sphi 0, %s18
    %s21 = sphi 0, %s19
    %s33 = sphi 0, %s35
    %s36 = sphi 0, %s33
    %s37 = sphi 0, %s36
    %s53 = sphi 0, %s37
    %s57 = sphi 0, %s57
    %s59 = sphi 0, %s57
    %s60 = sphi 0, %s59
    %s74 = sphi 0, %s60
    %s80 = sphi 0, %s82
    %s83 = sphi 0, %s80
    %s84 = sphi 0, %s83
    %s100 = sphi 0, %s84
    %s108 = sphi 0, %s110
    %s111 = sphi 0, %s108
    %s112 = sphi 0, %s111
    %s128 = sphi 0, %s112
  $region4: #{tpu_custom_call.1} parent=0 // loop_header_branch
    %12 = sbr.rel (%p10) target = $region8
  $region5: #{tpu_custom_call.1} parent=0 // loop_body
    %s14 = ssub.s32 %s9, 1
    %s15 = ssub.s32 %s9, 2
    %s22 = sadd.s32 1, %s17
    %p23 = scmp.ge.s32.totalorder %s22, 1
    %s24 = scalar_select %p23, 0, %s22
    %s25 = sadd.s32 1, %s16
    %s26 = scalar_select %p23, %s25, %s16
    %p27 = scmp.ge.s32.totalorder %s26, 2
    %s28 = scalar_select %p27, 0, %s26
    %s29 = ssub.s32 %s16, %s28
    %s30 = ssub.s32 %s17, %s24
    %s31 = sor.u32 %s29, %s30
    %p32 = scmp.eq.s32.totalorder %s31, 0
    %s34 = sadd.s32 %s33, 1
    %s35 = scalar_select %p32, %s33, %s34
    %p38 = pneg %p32
    %p39 = scmp.eq.s32.totalorder %s9, 1
    %p40 = por %p38, %p39
    %p41 = scmp.ne.s32.totalorder %s33, %s36
    %p42 = scmp.eq.s32.totalorder %s9, 0
    %p43 = por %p41, %p42
    %p44 = scmp.ne.s32.totalorder %s33, %s36
    %p45 = scmp.eq.s32.totalorder %s14, 1
    %p46 = por %p44, %p45
    %p47 = scmp.ne.s32.totalorder %s36, %s37
    %p48 = scmp.eq.s32.totalorder %s14, 0
    %p49 = por %p47, %p48
    %p50 = scmp.ne.s32.totalorder %s36, %s37
    %p51 = scmp.eq.s32.totalorder %s15, 1
    %p52 = por %p50, %p51
    %p54 = scmp.ne.s32.totalorder %s37, %s53
    %p55 = scmp.eq.s32.totalorder %s15, 0
    %p56 = por %p54, %p55
    %s58 = sadd.s32 %s57, 1
    %p61 = scmp.eq.s32.totalorder %s9, 1
    %p62 = scmp.ne.s32.totalorder %s57, %s59
    %p63 = scmp.eq.s32.totalorder %s9, 0
    %p64 = por %p62, %p63
    %p65 = scmp.ne.s32.totalorder %s57, %s59
    %p66 = scmp.eq.s32.totalorder %s14, 1
    %p67 = por %p65, %p66
    %p68 = scmp.ne.s32.totalorder %s59, %s60
    %p69 = scmp.eq.s32.totalorder %s14, 0
    %p70 = por %p68, %p69
    %p71 = scmp.ne.s32.totalorder %s59, %s60
    %p72 = scmp.eq.s32.totalorder %s15, 1
    %p73 = por %p71, %p72
    %p75 = scmp.ne.s32.totalorder %s60, %s74
    %p76 = scmp.eq.s32.totalorder %s15, 0
    %p77 = por %p75, %p76
    %s78 = ssub.s32 %s16, %s28
    %p79 = scmp.eq.s32.totalorder %s78, 0
    %s81 = sadd.s32 %s80, 1
    %s82 = scalar_select %p79, %s80, %s81
    %p85 = pneg %p79
    %p86 = scmp.eq.s32.totalorder %s9, 1
    %p87 = por %p85, %p86
    %p88 = scmp.ne.s32.totalorder %s80, %s83
    %p89 = scmp.eq.s32.totalorder %s9, 0
    %p90 = por %p88, %p89
    %p91 = scmp.ne.s32.totalorder %s80, %s83
    %p92 = scmp.eq.s32.totalorder %s14, 1
    %p93 = por %p91, %p92
    %p94 = scmp.ne.s32.totalorder %s83, %s84
    %p95 = scmp.eq.s32.totalorder %s14, 0
    %p96 = por %p94, %p95
    %p97 = scmp.ne.s32.totalorder %s83, %s84
    %p98 = scmp.eq.s32.totalorder %s15, 1
    %p99 = por %p97, %p98
    %p101 = scmp.ne.s32.totalorder %s84, %s100
    %p102 = scmp.eq.s32.totalorder %s15, 0
    %p103 = por %p101, %p102
    %s104 = ssub.s32 %s16, %s28
    %s105 = ssub.s32 %s17, %s24
    %s106 = sor.u32 %s104, %s105
    %p107 = scmp.eq.s32.totalorder %s106, 0
    %s109 = sadd.s32 %s108, 1
    %s110 = scalar_select %p107, %s108, %s109
    %p113 = pneg %p107
    %p114 = scmp.eq.s32.totalorder %s9, 1
    %p115 = por %p113, %p114
    %p116 = scmp.ne.s32.totalorder %s108, %s111
    %p117 = scmp.eq.s32.totalorder %s9, 0
    %p118 = por %p116, %p117
    %p119 = scmp.ne.s32.totalorder %s108, %s111
    %p120 = scmp.eq.s32.totalorder %s14, 1
    %p121 = por %p119, %p120
    %p122 = scmp.ne.s32.totalorder %s111, %s112
    %p123 = scmp.eq.s32.totalorder %s14, 0
    %p124 = por %p122, %p123
    %p125 = scmp.ne.s32.totalorder %s111, %s112
    %p126 = scmp.eq.s32.totalorder %s15, 1
    %p127 = por %p125, %p126
    %p129 = scmp.ne.s32.totalorder %s112, %s128
    %p130 = scmp.eq.s32.totalorder %s15, 0
    %p131 = por %p129, %p130
    %p132 = scmp.le.s32.totalorder 1, %s9
    %p133 = scmp.lt.s32.totalorder %s9, 3
    %p134 = pnand %p132, %p133
    %p135 = pneg %p134
    // Predicated region
    $region9: #{tpu_custom_call.1} parent=5 // pred_check
      _
    $region10: #{tpu_custom_call.1} parent=5 // pred_check_branch
      %137 = sbr.rel (%p134) target = $region12
    $region11: #{tpu_custom_call.1} parent=5 // pred_region
      %s138 = ssub.s32 %s9, 1
      // Predicated region
      $region13: #{tpu_custom_call.1} parent=11 // pred_check
        %p139 = pneg %p70
      $region14: #{tpu_custom_call.1} parent=11 // pred_check_branch
        %141 = sbr.rel (%p139) target = $region16
      $region15: #{tpu_custom_call.1} parent=11 // pred_region
        _
      $region16: #{tpu_custom_call.1} parent=11 // pred_fallthru
        _
    $region12: #{tpu_custom_call.1} parent=5 // pred_fallthru
      _
    %p142 = scmp.lt.s32.totalorder %s9, 2
    // Predicated region
    $region17: #{tpu_custom_call.1} parent=5 // pred_check
      %p143 = pneg %p142
    $region18: #{tpu_custom_call.1} parent=5 // pred_check_branch
      %145 = sbr.rel (%p143) target = $region20
    $region19: #{tpu_custom_call.1} parent=5 // pred_region
      // Predicated region
      $region21: #{tpu_custom_call.1} parent=19 // pred_check
        %p146 = pneg %p43
      $region22: #{tpu_custom_call.1} parent=19 // pred_check_branch
        %148 = sbr.rel (%p146) target = $region24
      $region23: #{tpu_custom_call.1} parent=19 // pred_region
        %p149 = scmp.lt.s32.totalorder %s16, 1
        %s150 = scalar_select %p149, %s16, 1
        %p151 = scmp.lt.s32.totalorder %s17, 0
        %s152 = scalar_select %p151, %s17, 0
        %s153 = sadd.s32 %s152, %s150
        %s154 = smul.addr %s153, 8
        %s155 = scalar_lea.vmem %s0, %s154
      $region24: #{tpu_custom_call.1} parent=19 // pred_fallthru
        _
      // Predicated region
      $region25: #{tpu_custom_call.1} parent=19 // pred_check
        %p156 = pneg %p90
      $region26: #{tpu_custom_call.1} parent=19 // pred_check_branch
        %158 = sbr.rel (%p156) target = $region28
      $region27: #{tpu_custom_call.1} parent=19 // pred_region
        %p159 = scmp.lt.s32.totalorder %s16, 1
        %s160 = scalar_select %p159, %s16, 1
        %s161 = scalar_lea.vmem %s2, %s160
      $region28: #{tpu_custom_call.1} parent=19 // pred_fallthru
        _
    $region20: #{tpu_custom_call.1} parent=5 // pred_fallthru
      _
    %p162 = scmp.le.s32.totalorder 1, %s9
    %p163 = scmp.lt.s32.totalorder %s9, 3
    %p164 = pnand %p162, %p163
    %p165 = pneg %p164
    // Predicated region
    $region29: #{tpu_custom_call.1} parent=5 // pred_check
      _
    $region30: #{tpu_custom_call.1} parent=5 // pred_check_branch
      %167 = sbr.rel (%p164) target = $region32
    $region31: #{tpu_custom_call.1} parent=5 // pred_region
      %s168 = ssub.s32 %s9, 1
      %p169 = scmp.lt.s32.totalorder %s18, 1
      %s170 = scalar_select %p169, %s18, 1
      %p171 = scmp.lt.s32.totalorder %s19, 0
      %s172 = scalar_select %p171, %s19, 0
      %s173 = sadd.s32 %s172, %s170
      %s174 = smul.addr %s173, 8
      %s175 = scalar_lea.vmem %s0, %s174
      %p176 = pneg %p49
      %p177 = pneg %p46
      %p178 = pneg %p70
      %p179 = pneg %p67
      %p180 = scmp.lt.s32.totalorder %s18, 1
      %s181 = scalar_select %p180, %s18, 1
      %s182 = scalar_lea.vmem %s2, %s181
      %p183 = pneg %p96
      %p184 = pneg %p93
      %p185 = pneg %p124
      %p186 = pneg %p121
      %p187 = scmp.lt.s32.totalorder %s18, 1
      %s188 = scalar_select %p187, %s18, 1
      %p189 = scmp.lt.s32.totalorder %s19, 0
      %s190 = scalar_select %p189, %s19, 0
      %s191 = sadd.s32 %s190, %s188
      %s192 = smul.addr %s191, 8
      %s193 = scalar_lea.vmem %s3, %s192
      %p194 = scmp.lt.s32.totalorder %s18, 1
      %s195 = scalar_select %p194, %s18, 1
      %p196 = scmp.lt.s32.totalorder %s19, 0
      %s197 = scalar_select %p196, %s19, 0
      %s198 = sadd.s32 %s197, %s195
      %s199 = smul.addr %s198, 8
      %s200 = scalar_lea.vmem %s0, %s199
      %p201 = scmp.lt.s32.totalorder %s18, 1
      %s202 = scalar_select %p201, %s18, 1
      %s203 = scalar_lea.vmem %s2, %s202
      %p204 = scmp.lt.s32.totalorder %s18, 1
      %s205 = scalar_select %p204, %s18, 1
      %p206 = scmp.lt.s32.totalorder %s19, 0
      %s207 = scalar_select %p206, %s19, 0
      %s208 = sadd.s32 %s207, %s205
      %s209 = smul.addr %s208, 8
      %s210 = scalar_lea.vmem %s3, %s209
      %v211 = vld [vmem:[%s200] sm:$0x7f]
      %v212 = vld [vmem:[%s1] sm:$0xff]
      %v213 = vld [vmem:[%s1 + $0x8] sm:$0xff]
      %v214 = vld [vmem:[%s1 + $0x10] sm:$0xff]
      %v215 = vld [vmem:[%s1 + $0x18] sm:$0xff]
      %v216 = vld [vmem:[%s203] sm:$0x1]
      %v218 = vlaneseq
      %v219 = vshrl.u32 %v218, 7
      %v220 = vsub.s32 0, %v219
      %v221 = vrot.slane %v216, %v220
      %vm223 = vcmask 261120
      %v225 = vsel %vm223, %v211, 0
      %227 = vmatprep.subr.mxu0 0.0
      %228 = vmatpush1.msra.mxu0 %v212
      %229 = vmatprep.subr.mxu0 0.0
      %230 = vmatpush1.msra.mxu0 %v213
      %231 = vmatprep.subr.mxu0 0.0
      %232 = vmatpush1.msra.mxu0 %v214
      %233 = vmatprep.subr.mxu0 0.0
      %234 = vmatpush1.msra.mxu0 %v215
      %235 = vmatprep.subr.mxu0 0.0
      %236 = vmatpush1.msra.mxu0 0.0
      %237 = vmatprep.subr.mxu0 0.0
      %238 = vmatpush1.msra.mxu0 0.0
      %239 = vmatprep.subr.mxu0 0.0
      %240 = vmatpush1.msra.mxu0 0.0
      %241 = vmatprep.subr.mxu0 0.0
      %242 = vmatpush1.msra.mxu0 0.0
      %243 = vmatprep.subr.mxu0 0.0
      %244 = vmatpush1.msra.mxu0 0.0
      %245 = vmatprep.subr.mxu0 0.0
      %246 = vmatpush1.msra.mxu0 0.0
      %247 = vmatprep.subr.mxu0 0.0
      %248 = vmatpush1.msra.mxu0 0.0
      %249 = vmatprep.subr.mxu0 0.0
      %250 = vmatpush1.msra.mxu0 0.0
      %251 = vmatprep.subr.mxu0 0.0
      %252 = vmatpush1.msra.mxu0 0.0
      %253 = vmatprep.subr.mxu0 0.0
      %254 = vmatpush1.msra.mxu0 0.0
      %255 = vmatprep.subr.mxu0 0.0
      %256 = vmatpush1.msra.mxu0 0.0
      %257 = vmatprep.subr.mxu0 0.0
      %258 = vmatpush1.msra.mxu0 0.0
      %259 = vmatprep.subr.mxu0 0.0
      %260 = vmatpush1.msra.mxu0 0.0
      %261 = vmatprep.subr.mxu0 0.0
      %262 = vmatpush1.msra.mxu0 0.0
      %263 = vmatprep.subr.mxu0 0.0
      %264 = vmatpush1.msra.mxu0 0.0
      %265 = vmatprep.subr.mxu0 0.0
      %266 = vmatpush1.msra.mxu0 0.0
      %267 = vmatprep.subr.mxu0 0.0
      %268 = vmatpush1.msra.mxu0 0.0
      %269 = vmatprep.subr.mxu0 0.0
      %270 = vmatpush1.msra.mxu0 0.0
      %271 = vmatprep.subr.mxu0 0.0
      %272 = vmatpush1.msra.mxu0 0.0
      %273 = vmatprep.subr.mxu0 0.0
      %274 = vmatpush1.msra.mxu0 0.0
      %275 = vmatprep.subr.mxu0 0.0
      %276 = vmatpush1.msra.mxu0 0.0
      %277 = vmatprep.subr.mxu0 0.0
      %278 = vmatpush1.msra.mxu0 0.0
      %279 = vmatprep.subr.mxu0 0.0
      %280 = vmatpush1.msra.mxu0 0.0
      %281 = vmatprep.subr.mxu0 0.0
      %282 = vmatpush1.msra.mxu0 0.0
      %283 = vmatprep.subr.mxu0 0.0
      %284 = vmatpush1.msra.mxu0 0.0
      %285 = vmatprep.subr.mxu0 0.0
      %286 = vmatpush1.msra.mxu0 0.0
      %287 = vmatprep.subr.mxu0 0.0
      %288 = vmatpush1.msra.mxu0 0.0
      %289 = vmatprep.subr.mxu0 0.0
      %290 = vmatpush1.msra.mxu0 0.0
      %291 = vmatprep.mubr.f32.mxu0 0.0
      %292 = vmatmul.mubr.f32.gmra.mrb[0].mxu0 %v225
      %v293 = vpop.f32.mrb[0].mxu0
      %v294 = vadd.f32 %v221, %v293
      %v295 = vpop.f32.mrb[0].mxu0
      %296 = vdwg.mxu0
      %v297 = vmul.f32 %v294, 0.5
      %v298 = vmul.f32 %v294, 0.70710677
      %v299 = verf.f32.pop %v298
      %v300 = vadd.f32 %v299, 1.0
      %v301 = vmul.f32 %v297, %v300
      %vm302 = vcmask 260096
      %303 = vst.msk [vmem:[%s210] sm:$0x7f] %vm302, %v301
      %p304 = scmp.lt.s32.totalorder %s18, 1
      %s305 = scalar_select %p304, %s18, 1
      %p306 = scmp.lt.s32.totalorder %s19, 0
      %s307 = scalar_select %p306, %s19, 0
      %s308 = sadd.s32 %s307, %s305
      %s309 = smul.addr %s308, 8
      %s310 = scalar_lea.vmem %s3, %s309
      // Predicated region
      $region33: #{tpu_custom_call.1} parent=31 // pred_check
        %p311 = pneg %p121
      $region34: #{tpu_custom_call.1} parent=31 // pred_check_branch
        %313 = sbr.rel (%p311) target = $region36
      $region35: #{tpu_custom_call.1} parent=31 // pred_region
        _
      $region36: #{tpu_custom_call.1} parent=31 // pred_fallthru
        _
    $region32: #{tpu_custom_call.1} parent=5 // pred_fallthru
      _
    %p314 = scmp.le.s32.totalorder 2, %s9
    // Predicated region
    $region37: #{tpu_custom_call.1} parent=5 // pred_check
      %p315 = pneg %p314
    $region38: #{tpu_custom_call.1} parent=5 // pred_check_branch
      %317 = sbr.rel (%p315) target = $region40
    $region39: #{tpu_custom_call.1} parent=5 // pred_region
      %s318 = ssub.s32 %s9, 2
      // Predicated region
      $region41: #{tpu_custom_call.1} parent=39 // pred_check
        %p319 = pneg %p127
      $region42: #{tpu_custom_call.1} parent=39 // pred_check_branch
        %321 = sbr.rel (%p319) target = $region44
      $region43: #{tpu_custom_call.1} parent=39 // pred_region
        %p322 = scmp.lt.s32.totalorder %s20, 1
        %s323 = scalar_select %p322, %s20, 1
        %p324 = scmp.lt.s32.totalorder %s21, 0
        %s325 = scalar_select %p324, %s21, 0
        %s326 = sadd.s32 %s325, %s323
        %s327 = smul.addr %s326, 8
        %s328 = scalar_lea.vmem %s3, %s327
      $region44: #{tpu_custom_call.1} parent=39 // pred_fallthru
        _
    $region40: #{tpu_custom_call.1} parent=5 // pred_fallthru
      _
  $region6: #{tpu_custom_call.1} parent=0 // loop_footer
    %s13 = sadd.s32 1, %s9
  $region7: #{tpu_custom_call.1} parent=0 // loop_footer_branch
    %8 = sbr.rel target = $region3
  $region8: #{tpu_custom_call.1} parent=0 // loop_exit
    _

</llo_original>
